<compile_context>
chip_gen: v7x
topology: tpu7x:2x2x1
jax: 0.10.0
libtpu: 0.0.40
codegen_flags: <defaults>
</compile_context>

<pallas_src>
import functools

import jax
import jax.numpy as jnp
from jax.experimental import pallas as pl
from jax.experimental.pallas import tpu as pltpu

_LANE = 128
_MIN_VMEM_LIMIT = 32 * 1024 * 1024
_BLOCK_CAP_BYTES = 2 * 1024 * 1024   # soft cap on one x block (in x dtype)


def _round_up(v, m):
    return (v + m - 1) // m * m


def _sublane(dtype):
    # Sub-32-bit dtypes pack along sublanes: 8 rows f32, 16 bf16, 32 int8/fp8.
    return max(8, 32 // jnp.dtype(dtype).itemsize)


def _vmem_budget_bytes():
    """~3/4 of per-core VMEM as working budget (headroom for Mosaic scratch)."""
    phys = None
    try:
        phys = int(pltpu.get_tpu_info().vmem_capacity_bytes)
    except Exception:
        phys = None
    if not phys:
        kind = ""
        try:
            kind = jax.devices()[0].device_kind.lower()
        except Exception:
            pass
        # v5e / v6e have 128 MiB per TensorCore; v7x has 64 MiB.
        phys = 64 * 1024 * 1024 if "v7" in kind else 128 * 1024 * 1024
    return max(_MIN_VMEM_LIMIT, (phys * 3) // 4)


# ---------------------------------------------------------------------------
# Single-pass path: whole T extent resident per block (optionally C-tiled).
# 1 HBM read + 1 HBM write of x.
# ---------------------------------------------------------------------------
def _insnorm_single_pass_kernel(x_ref, w_ref, b_ref, o_ref, *, eps, n_rows):
    # x_ref: (T, c_tile) slab of one batch element / channel tile.
    # w_ref/b_ref: (1, c_tile) f32.  Reduction over axis 0 (T) only, so any
    # garbage in a masked boundary channel block stays confined to its lanes.
    xf = x_ref[...].astype(jnp.float32)
    n = jnp.float32(n_rows)
    mean = jnp.sum(xf, axis=0, keepdims=True) / n            # (1, c_tile)
    d = xf - mean                                            # centered once
    var = jnp.sum(d * d, axis=0, keepdims=True) / (n - 1.0)  # unbiased (torch)
    inv = jax.lax.rsqrt(var + jnp.float32(eps))
    scale = w_ref[...] * inv                                 # (1, c_tile)
    o_ref[...] = (d * scale + b_ref[...]).astype(o_ref.dtype)


def _ins_norm_single_pass(x, w2, b2, eps, c_tile, vmem_limit):
    B, T, C = x.shape
    isz = jnp.dtype(x.dtype).itemsize
    nC = pl.cdiv(C, c_tile)
    kernel = functools.partial(_insnorm_single_pass_kernel, eps=eps, n_rows=T)
    cost = pl.CostEstimate(flops=8 * B * T * C,
                           transcendentals=B * C,
                           bytes_accessed=2 * B * T * C * isz)
    return pl.pallas_call(
        kernel,
        out_shape=jax.ShapeDtypeStruct((B, T, C), x.dtype),
        grid=(B, nC),
        in_specs=[
            pl.BlockSpec((pl.Squeezed(), T, c_tile), lambda b, c: (b, 0, c)),
            pl.BlockSpec((1, c_tile), lambda b, c: (0, c)),
            pl.BlockSpec((1, c_tile), lambda b, c: (0, c)),
        ],
        out_specs=pl.BlockSpec((pl.Squeezed(), T, c_tile), lambda b, c: (b, 0, c)),
        compiler_params=pltpu.CompilerParams(
            dimension_semantics=("parallel", "parallel"),
            vmem_limit_bytes=int(vmem_limit)),
        cost_estimate=cost,
    )(x, w2, b2)


# ---------------------------------------------------------------------------
# Fallback: T-tiled two-sweep (stats pallas_call, then apply pallas_call).
# Used only when even a 128-channel-wide resident slab does not fit VMEM.
# ---------------------------------------------------------------------------
def _insnorm_stats_kernel(x_ref, w_ref, b_ref, scale_ref, shift_ref,
                          sum_sc, sq_sc, *, eps, n_rows, t_tile):
    t = pl.program_id(1)
    nT = pl.num_programs(1)

    @pl.when(t == 0)
    def _():
        sum_sc[...] = jnp.zeros_like(sum_sc)
        sq_sc[...] = jnp.zeros_like(sq_sc)

    xf = x_ref[...].astype(jnp.float32)                      # (t_tile, C)

    def _acc(xv):
        sum_sc[...] += jnp.sum(xv, axis=0, keepdims=True)
        sq_sc[...] += jnp.sum(xv * xv, axis=0, keepdims=True)

    if n_rows % t_tile != 0:
        # Boundary-row masking only on the last (partial) T tile; interior
        # tiles accumulate unmasked (no per-element VPU mask work).
        @pl.when(t == nT - 1)
        def _():
            row = t * t_tile + jax.lax.broadcasted_iota(jnp.int32, xf.shape, 0)
            _acc(jnp.where(row < n_rows, xf, 0.0))

        @pl.when(t != nT - 1)
        def _():
            _acc(xf)
    else:
        _acc(xf)

    @pl.when(t == nT - 1)
    def _():
        n = jnp.float32(n_rows)
        mean = sum_sc[...] / n
        # Single-pass variance (streamed data); clamp guards FP cancellation.
        var = jnp.maximum((sq_sc[...] - sum_sc[...] * mean) / (n - 1.0), 0.0)
        inv = jax.lax.rsqrt(var + jnp.float32(eps))
        scale = w_ref[...] * inv
        scale_ref[...] = scale
        shift_ref[...] = b_ref[...] - mean * scale


def _insnorm_apply_kernel(x_ref, scale_ref, shift_ref, o_ref):
    xf = x_ref[...].astype(jnp.float32)                      # (t_tile, C)
    o_ref[...] = (xf * scale_ref[...] + shift_ref[...]).astype(o_ref.dtype)


def _ins_norm_two_sweep(x, w2, b2, eps, t_tile, vmem_limit):
    B, T, C = x.shape
    isz = jnp.dtype(x.dtype).itemsize
    nT = pl.cdiv(T, t_tile)

    stats_kernel = functools.partial(
        _insnorm_stats_kernel, eps=eps, n_rows=T, t_tile=t_tile)
    scale, shift = pl.pallas_call(
        stats_kernel,
        out_shape=(jax.ShapeDtypeStruct((B, 1, C), jnp.float32),
                   jax.ShapeDtypeStruct((B, 1, C), jnp.float32)),
        grid=(B, nT),
        in_specs=[
            pl.BlockSpec((pl.Squeezed(), t_tile, C), lambda b, t: (b, t, 0)),
            pl.BlockSpec((1, C), lambda b, t: (0, 0)),
            pl.BlockSpec((1, C), lambda b, t: (0, 0)),
        ],
        out_specs=(
            pl.BlockSpec((pl.Squeezed(), 1, C), lambda b, t: (b, 0, 0)),
            pl.BlockSpec((pl.Squeezed(), 1, C), lambda b, t: (b, 0, 0)),
        ),
        scratch_shapes=[pltpu.VMEM((1, C), jnp.float32),
                        pltpu.VMEM((1, C), jnp.float32)],
        compiler_params=pltpu.CompilerParams(
            dimension_semantics=("parallel", "arbitrary"),
            vmem_limit_bytes=int(vmem_limit)),
        cost_estimate=pl.CostEstimate(flops=3 * B * T * C,
                                      transcendentals=B * C,
                                      bytes_accessed=B * T * C * isz),
    )(x, w2, b2)

    return pl.pallas_call(
        _insnorm_apply_kernel,
        out_shape=jax.ShapeDtypeStruct((B, T, C), x.dtype),
        grid=(B, nT),
        in_specs=[
            pl.BlockSpec((pl.Squeezed(), t_tile, C), lambda b, t: (b, t, 0)),
            pl.BlockSpec((pl.Squeezed(), 1, C), lambda b, t: (b, 0, 0)),
            pl.BlockSpec((pl.Squeezed(), 1, C), lambda b, t: (b, 0, 0)),
        ],
        out_specs=pl.BlockSpec((pl.Squeezed(), t_tile, C),
                               lambda b, t: (b, t, 0)),
        compiler_params=pltpu.CompilerParams(
            dimension_semantics=("parallel", "parallel"),
            vmem_limit_bytes=int(vmem_limit)),
        cost_estimate=pl.CostEstimate(flops=2 * B * T * C,
                                      transcendentals=0,
                                      bytes_accessed=2 * B * T * C * isz),
    )(x, scale, shift)


# ---------------------------------------------------------------------------
# Wrapper: path / tile selection (no activation padding or slicing).
# ---------------------------------------------------------------------------
def ins_norm(x, weight, bias, eps=1e-5, *, vmem_budget_bytes=None):
    """InsNorm forward.  x: (B, T, C); weight/bias: (C,).  Returns (B, T, C)."""
    B, T, C = x.shape
    isz = jnp.dtype(x.dtype).itemsize
    sub = _sublane(x.dtype)

    hw_budget = _vmem_budget_bytes()
    budget = hw_budget if vmem_budget_bytes is None else min(int(vmem_budget_bytes),
                                                             hw_budget)
    vmem_limit = hw_budget

    # Only the tiny (C,) params are reshaped/cast; x is never padded or sliced.
    w2 = weight.astype(jnp.float32).reshape(1, C)
    b2 = bias.astype(jnp.float32).reshape(1, C)

    # VMEM bytes per element of a resident (T x c) x-block:
    # 2 double-buffered input bufs + 2 output bufs + ~3 f32 temporaries.
    per_elem = 4 * isz + 12

    fits_full = T * C * per_elem <= budget
    can_ctile = C > _LANE and T * _LANE * per_elem <= budget

    if fits_full and (T * C * isz <= _BLOCK_CAP_BYTES or not can_ctile):
        # Single-pass, whole (T, C) slab per batch element.
        return _ins_norm_single_pass(x, w2, b2, eps, C, vmem_limit)

    if can_ctile:
        # Single-pass, channel-tiled: still 1 read + 1 write of x, more grid
        # cells (better pipelining and v7x dual-TC balance).
        by_budget = budget // (T * per_elem)
        by_cap = max(_LANE, _BLOCK_CAP_BYTES // (T * isz))
        c_tile = min(by_budget, by_cap, (C // _LANE) * _LANE)
        c_tile = max(_LANE, (c_tile // _LANE) * _LANE)
        return _ins_norm_single_pass(x, w2, b2, eps, int(c_tile), vmem_limit)

    # Fallback: T-tiled two-sweep (2 reads + 1 write of x).
    by_budget = budget // (C * per_elem)
    by_cap = max(sub, _BLOCK_CAP_BYTES // (C * isz))
    t_tile = min(by_budget, by_cap, 1024, _round_up(T, sub))
    t_tile = max(sub, (t_tile // sub) * sub)
    return _ins_norm_two_sweep(x, w2, b2, eps, int(t_tile), vmem_limit)


def ins_norm_ref(x, weight, bias, eps=1e-5):
    # Pure-JAX reference mirroring the PyTorch forward.
    xt = jnp.transpose(x, (0, 2, 1))                         # (B, C, T)
    mean = jnp.mean(xt, axis=-1, keepdims=True)
    var = jnp.var(xt, axis=-1, keepdims=True, ddof=1)        # unbiased (torch default)
    y = (xt - mean) / jnp.sqrt(var + eps)
    y = weight.reshape(1, -1, 1) * y + bias.reshape(1, -1, 1)
    return jnp.transpose(y, (0, 2, 1))                       # (B, T, C)


if __name__ == "__main__":
    key = jax.random.PRNGKey(0)
    kx, kw, kb, kx2, kx3, kw3, kb3 = jax.random.split(key, 7)

    # --- Small module-consistent shape (single-pass, whole-slab path).
    B, T, C = 2, 8, 32
    x = jax.random.normal(kx, (B, T, C), dtype=jnp.float32)
    # Non-trivial affine params (module default is ones/zeros; forward is generic).
    weight = 1.0 + 0.1 * jax.random.normal(kw, (C,), dtype=jnp.float32)
    bias = 0.1 * jax.random.normal(kb, (C,), dtype=jnp.float32)
    out = jax.block_until_ready(ins_norm(x, weight, bias, eps=1e-5))
    ref = ins_norm_ref(x, weight, bias, eps=1e-5)
    assert out.shape == (B, T, C)
    assert jnp.allclose(out, ref, atol=1e-4, rtol=1e-4), \
        float(jnp.max(jnp.abs(out - ref)))

    # --- Force the two-sweep fallback (tiny budget) with T not a multiple of
    #     the tile, exercising the gated boundary-row masking.
    T2 = 20
    x2 = jax.random.normal(kx2, (B, T2, C), dtype=jnp.float32)
    out2 = jax.block_until_ready(
        ins_norm(x2, weight, bias, eps=1e-5, vmem_budget_bytes=1))
    ref2 = ins_norm_ref(x2, weight, bias, eps=1e-5)
    assert out2.shape == (B, T2, C)
    assert jnp.allclose(out2, ref2, atol=1e-4, rtol=1e-4), \
        float(jnp.max(jnp.abs(out2 - ref2)))

    # --- Force the channel-tiled single-pass path with C not a multiple of 128
    #     (c_tile = 128, masked boundary channel block; no x pad / slice).
    B3, T3, C3 = 2, 16, 160
    x3 = jax.random.normal(kx3, (B3, T3, C3), dtype=jnp.float32)
    w3 = 1.0 + 0.1 * jax.random.normal(kw3, (C3,), dtype=jnp.float32)
    b3 = 0.1 * jax.random.normal(kb3, (C3,), dtype=jnp.float32)
    out3 = jax.block_until_ready(
        ins_norm(x3, w3, b3, eps=1e-5, vmem_budget_bytes=60000))
    ref3 = ins_norm_ref(x3, w3, b3, eps=1e-5)
    assert out3.shape == (B3, T3, C3)
    assert jnp.allclose(out3, ref3, atol=1e-4, rtol=1e-4), \
        float(jnp.max(jnp.abs(out3 - ref3)))

    print("KERNEL_OK")
</pallas_src>

<mosaic_0001>
module attributes {stable_mosaic.version = 11 : i64} {
  func.func @_insnorm_single_pass_kernel(%arg0: i32, %arg1: i32, %arg2: memref<1x8x32xf32, #tpu.memory_space<vmem>>, %arg3: memref<1x32xf32, #tpu.memory_space<vmem>>, %arg4: memref<1x32xf32, #tpu.memory_space<vmem>>, %arg5: memref<1x8x32xf32, #tpu.memory_space<vmem>>) attributes {dimension_semantics = [#tpu.dimension_semantics<parallel>, #tpu.dimension_semantics<parallel>], iteration_bounds = array<i64: 2, 1>, scalar_prefetch = 0 : i64, scratch_operands = 0 : i64, tpu.core_type = #tpu.core_type<tc>, window_params = [{transform_indices = @transform_0, window_bounds = array<i64: 1, 8, 32>}, {transform_indices = @transform_1, window_bounds = array<i64: 1, 32>}, {transform_indices = @transform_2, window_bounds = array<i64: 1, 32>}, {transform_indices = @transform_3, window_bounds = array<i64: 1, 8, 32>}]} {
    %c0 = arith.constant 0 : index
    %c0_0 = arith.constant 0 : index
    %c0_1 = arith.constant 0 : index
    %0 = vector.load %arg2[%c0, %c0_0, %c0_1] : memref<1x8x32xf32, #tpu.memory_space<vmem>>, vector<1x8x32xf32>
    %1 = vector.shape_cast %0 : vector<1x8x32xf32> to vector<8x32xf32>
    %cst = arith.constant dense<0.000000e+00> : vector<32xf32>
    %2 = vector.multi_reduction <add>, %1, %cst [0] : vector<8x32xf32> to vector<32xf32>
    %3 = vector.shape_cast %2 : vector<32xf32> to vector<1x32xf32>
    %cst_2 = arith.constant 8.000000e+00 : f32
    %4 = vector.broadcast %cst_2 : f32 to vector<1x32xf32>
    %5 = arith.divf %3, %4 : vector<1x32xf32>
    %6 = vector.broadcast %5 : vector<1x32xf32> to vector<8x32xf32>
    %7 = arith.subf %1, %6 : vector<8x32xf32>
    %8 = arith.mulf %7, %7 : vector<8x32xf32>
    %cst_3 = arith.constant dense<0.000000e+00> : vector<32xf32>
    %9 = vector.multi_reduction <add>, %8, %cst_3 [0] : vector<8x32xf32> to vector<32xf32>
    %10 = vector.shape_cast %9 : vector<32xf32> to vector<1x32xf32>
    %cst_4 = arith.constant 8.000000e+00 : f32
    %cst_5 = arith.constant 1.000000e+00 : f32
    %11 = arith.subf %cst_4, %cst_5 : f32
    %12 = vector.broadcast %11 : f32 to vector<1x32xf32>
    %13 = arith.divf %10, %12 : vector<1x32xf32>
    %cst_6 = arith.constant 9.99999974E-6 : f32
    %14 = vector.broadcast %cst_6 : f32 to vector<1x32xf32>
    %15 = arith.addf %13, %14 : vector<1x32xf32>
    %16 = math.rsqrt %15 : vector<1x32xf32>
    %c0_7 = arith.constant 0 : index
    %c0_8 = arith.constant 0 : index
    %17 = vector.load %arg3[%c0_7, %c0_8] : memref<1x32xf32, #tpu.memory_space<vmem>>, vector<1x32xf32>
    %18 = arith.mulf %17, %16 : vector<1x32xf32>
    %19 = vector.broadcast %18 : vector<1x32xf32> to vector<8x32xf32>
    %20 = arith.mulf %7, %19 : vector<8x32xf32>
    %c0_9 = arith.constant 0 : index
    %c0_10 = arith.constant 0 : index
    %21 = vector.load %arg4[%c0_9, %c0_10] : memref<1x32xf32, #tpu.memory_space<vmem>>, vector<1x32xf32>
    %22 = vector.broadcast %21 : vector<1x32xf32> to vector<8x32xf32>
    %23 = arith.addf %20, %22 : vector<8x32xf32>
    %c0_11 = arith.constant 0 : index
    %c0_12 = arith.constant 0 : index
    %c0_13 = arith.constant 0 : index
    %24 = vector.load %arg5[%c0_11, %c0_12, %c0_13] : memref<1x8x32xf32, #tpu.memory_space<vmem>>, vector<1x8x32xf32>
    %25 = vector.shape_cast %24 : vector<1x8x32xf32> to vector<8x32xf32>
    %26 = vector.shape_cast %23 : vector<8x32xf32> to vector<1x8x32xf32>
    tpu.vector_store %arg5[%c0_11, %c0_12, %c0_13], %26 {strides = array<i32>} : memref<1x8x32xf32, #tpu.memory_space<vmem>>, vector<1x8x32xf32>,
    return
  }
  func.func @transform_0(%arg0: i32, %arg1: i32) -> (i32, i32, i32) {
    %c0_i32 = arith.constant 0 : i32
    %c0_i32_0 = arith.constant 0 : i32
    return %arg0, %c0_i32, %arg1 : i32, i32, i32
  }
  func.func @transform_1(%arg0: i32, %arg1: i32) -> (i32, i32) {
    %c0_i32 = arith.constant 0 : i32
    %c0_i32_0 = arith.constant 0 : i32
    return %c0_i32, %arg1 : i32, i32
  }
  func.func @transform_2(%arg0: i32, %arg1: i32) -> (i32, i32) {
    %c0_i32 = arith.constant 0 : i32
    %c0_i32_0 = arith.constant 0 : i32
    return %c0_i32, %arg1 : i32, i32
  }
  func.func @transform_3(%arg0: i32, %arg1: i32) -> (i32, i32, i32) {
    %c0_i32 = arith.constant 0 : i32
    %c0_i32_0 = arith.constant 0 : i32
    return %arg0, %c0_i32, %arg1 : i32, i32, i32
  }
}

</mosaic_0001>

<llo_original>
// kernel: tpu_custom_call.1
$region0: #{tpu_custom_call.1}
  #allocation0 [shape = 'u32[]', space=smem, size = 0x4, offset = 0x4, fixed_abs, tag = 'smem constant byte address 0x4 - core index']
  #allocation1 [shape = 'u32[144,128]{1,0:T(1,128)}', space=vmem, size = 0x12000, scoped, tag = 'internal scratch']
  %s0 = inlined_call_operand.hbm [shape: f32[2,8,32], index: 0, kind: input, shape index: {}]
  %s1 = inlined_call_operand.hbm [shape: f32[1,32], index: 1, kind: input, shape index: {}]
  %s2 = inlined_call_operand.hbm [shape: f32[1,32], index: 2, kind: input, shape index: {}]
  %s3 = inlined_call_operand.hbm [shape: f32[2,8,32], index: 3, kind: output, shape index: {}]
  %s4 = sld [smem:[#allocation0]]
  $region57: #{tpu_custom_call.1} parent=0
    _
  %s6 = ssub.s32 1, %s4
  %s7 = scalar_select 0, %s6, %s4
  $region1: #{tpu_custom_call.1} parent=0
    #allocation2 [shape = 'u8[8192]{0}', space=vmem, size = 0x2000, scoped, tag = 'input window, operand 0']
    #allocation3 [shape = 's32[2]{0}', space=sflag, size = 0x8, scoped, tag = 'scoped memory for tpu_custom_call.1']
    #allocation4 [shape = 's32[2]{0}', space=sflag, size = 0x8, scoped, tag = 'scoped memory for tpu_custom_call.1']
    #allocation5 [shape = 'u8[512]{0}', space=vmem, size = 0x400, scoped, tag = 'input window, operand 1, single buffered']
    #allocation6 [shape = 's32[1]{0}', space=sflag, size = 0x4, scoped, tag = 'scoped memory for tpu_custom_call.1']
    #allocation7 [shape = 'u8[512]{0}', space=vmem, size = 0x400, scoped, tag = 'input window, operand 2, single buffered']
    #allocation8 [shape = 'u8[8192]{0}', space=vmem, size = 0x2000, scoped, tag = 'output window, operand 0']
    %8 = vsyncpa [#allocation3], 0
    %s9 = scalar_lea.sflag [#allocation3], 1
    %10 = vsyncpa %s9, 0
    %11 = vsyncpa [#allocation6], 0
    %12 = vsyncpa [#allocation4], 0
    %s13 = scalar_lea.sflag [#allocation4], 1
    %14 = vsyncpa %s13, 0
    loop: start=0, step=1, limit=4
    $region2: #{tpu_custom_call.1} parent=1 // loop_pre_header
      _
    $region3: #{tpu_custom_call.1} parent=1 // loop_header
      %s16 = sphi 0, %s20
      %p17 = scmp.ge.s32.totalorder %s16, 4
      %s23 = sphi 0, %s35
      %s24 = sphi 0, %s31
      %s25 = sphi 0, %s23
      %s26 = sphi 0, %s24
      %s27 = sphi 0, %s25
      %s28 = sphi 0, %s26
      %s40 = sphi 0, %s42
      %s43 = sphi 0, %s40
      %s44 = sphi 0, %s43
      %s60 = sphi 0, %s44
      %s66 = sphi 0, %s68
      %s69 = sphi 0, %s66
      %s70 = sphi 0, %s69
      %s86 = sphi 0, %s70
      %s92 = sphi 0, %s94
      %s95 = sphi 0, %s92
      %s96 = sphi 0, %s95
      %s112 = sphi 0, %s96
      %s120 = sphi 0, %s122
      %s123 = sphi 0, %s120
      %s124 = sphi 0, %s123
      %s140 = sphi 0, %s124
    $region4: #{tpu_custom_call.1} parent=1 // loop_header_branch
      %19 = sbr.rel (%p17) target = $region8
    $region5: #{tpu_custom_call.1} parent=1 // loop_body
      %s21 = ssub.s32 %s16, 1
      %s22 = ssub.s32 %s16, 2
      %s29 = sadd.s32 1, %s24
      %p30 = scmp.ge.s32.totalorder %s29, 1
      %s31 = scalar_select %p30, 0, %s29
      %s32 = sadd.s32 1, %s23
      %s33 = scalar_select %p30, %s32, %s23
      %p34 = scmp.ge.s32.totalorder %s33, 2
      %s35 = scalar_select %p34, 0, %s33
      %s36 = ssub.s32 %s23, %s35
      %s37 = ssub.s32 %s24, %s31
      %s38 = sor.u32 %s36, %s37
      %p39 = scmp.eq.s32.totalorder %s38, 0
      %s41 = sadd.s32 %s40, 1
      %s42 = scalar_select %p39, %s40, %s41
      %p45 = pneg %p39
      %p46 = scmp.eq.s32.totalorder %s16, 1
      %p47 = por %p45, %p46
      %p48 = scmp.ne.s32.totalorder %s40, %s43
      %p49 = scmp.eq.s32.totalorder %s16, 0
      %p50 = por %p48, %p49
      %p51 = scmp.ne.s32.totalorder %s40, %s43
      %p52 = scmp.eq.s32.totalorder %s21, 1
      %p53 = por %p51, %p52
      %p54 = scmp.ne.s32.totalorder %s43, %s44
      %p55 = scmp.eq.s32.totalorder %s21, 0
      %p56 = por %p54, %p55
      %p57 = scmp.ne.s32.totalorder %s43, %s44
      %p58 = scmp.eq.s32.totalorder %s22, 1
      %p59 = por %p57, %p58
      %p61 = scmp.ne.s32.totalorder %s44, %s60
      %p62 = scmp.eq.s32.totalorder %s22, 0
      %p63 = por %p61, %p62
      %s64 = ssub.s32 %s24, %s31
      %p65 = scmp.eq.s32.totalorder %s64, 0
      %s67 = sadd.s32 %s66, 1
      %s68 = scalar_select %p65, %s66, %s67
      %p71 = pneg %p65
      %p72 = scmp.eq.s32.totalorder %s16, 1
      %p73 = por %p71, %p72
      %p74 = scmp.ne.s32.totalorder %s66, %s69
      %p75 = scmp.eq.s32.totalorder %s16, 0
      %p76 = por %p74, %p75
      %p77 = scmp.ne.s32.totalorder %s66, %s69
      %p78 = scmp.eq.s32.totalorder %s21, 1
      %p79 = por %p77, %p78
      %p80 = scmp.ne.s32.totalorder %s69, %s70
      %p81 = scmp.eq.s32.totalorder %s21, 0
      %p82 = por %p80, %p81
      %p83 = scmp.ne.s32.totalorder %s69, %s70
      %p84 = scmp.eq.s32.totalorder %s22, 1
      %p85 = por %p83, %p84
      %p87 = scmp.ne.s32.totalorder %s70, %s86
      %p88 = scmp.eq.s32.totalorder %s22, 0
      %p89 = por %p87, %p88
      %s90 = ssub.s32 %s24, %s31
      %p91 = scmp.eq.s32.totalorder %s90, 0
      %s93 = sadd.s32 %s92, 1
      %s94 = scalar_select %p91, %s92, %s93
      %p97 = pneg %p91
      %p98 = scmp.eq.s32.totalorder %s16, 1
      %p99 = por %p97, %p98
      %p100 = scmp.ne.s32.totalorder %s92, %s95
      %p101 = scmp.eq.s32.totalorder %s16, 0
      %p102 = por %p100, %p101
      %p103 = scmp.ne.s32.totalorder %s92, %s95
      %p104 = scmp.eq.s32.totalorder %s21, 1
      %p105 = por %p103, %p104
      %p106 = scmp.ne.s32.totalorder %s95, %s96
      %p107 = scmp.eq.s32.totalorder %s21, 0
      %p108 = por %p106, %p107
      %p109 = scmp.ne.s32.totalorder %s95, %s96
      %p110 = scmp.eq.s32.totalorder %s22, 1
      %p111 = por %p109, %p110
      %p113 = scmp.ne.s32.totalorder %s96, %s112
      %p114 = scmp.eq.s32.totalorder %s22, 0
      %p115 = por %p113, %p114
      %s116 = ssub.s32 %s23, %s35
      %s117 = ssub.s32 %s24, %s31
      %s118 = sor.u32 %s116, %s117
      %p119 = scmp.eq.s32.totalorder %s118, 0
      %s121 = sadd.s32 %s120, 1
      %s122 = scalar_select %p119, %s120, %s121
      %p125 = pneg %p119
      %p126 = scmp.eq.s32.totalorder %s16, 1
      %p127 = por %p125, %p126
      %p128 = scmp.ne.s32.totalorder %s120, %s123
      %p129 = scmp.eq.s32.totalorder %s16, 0
      %p130 = por %p128, %p129
      %p131 = scmp.ne.s32.totalorder %s120, %s123
      %p132 = scmp.eq.s32.totalorder %s21, 1
      %p133 = por %p131, %p132
      %p134 = scmp.ne.s32.totalorder %s123, %s124
      %p135 = scmp.eq.s32.totalorder %s21, 0
      %p136 = por %p134, %p135
      %p137 = scmp.ne.s32.totalorder %s123, %s124
      %p138 = scmp.eq.s32.totalorder %s22, 1
      %p139 = por %p137, %p138
      %p141 = scmp.ne.s32.totalorder %s124, %s140
      %p142 = scmp.eq.s32.totalorder %s22, 0
      %p143 = por %p141, %p142
      %p144 = scmp.le.s32.totalorder 1, %s16
      %p145 = scmp.lt.s32.totalorder %s16, 3
      %p146 = pnand %p144, %p145
      %p147 = pneg %p146
      // Predicated region
      $region9: #{tpu_custom_call.1} parent=5 // pred_check
        _
      $region10: #{tpu_custom_call.1} parent=5 // pred_check_branch
        %149 = sbr.rel (%p146) target = $region12
      $region11: #{tpu_custom_call.1} parent=5 // pred_region
        %s150 = ssub.s32 %s16, 1
        // Predicated region
        $region13: #{tpu_custom_call.1} parent=11 // pred_check
          %p151 = pneg %p82
        $region14: #{tpu_custom_call.1} parent=11 // pred_check_branch
          %153 = sbr.rel (%p151) target = $region16
        $region15: #{tpu_custom_call.1} parent=11 // pred_region
          %s155 = ssub.s32 16, 16
          %156 = vsyncadd [#allocation6], %s155
          %s157 = smul.addr %s26, 16
          %s158 = scalar_lea.hbm %s1, %s157
          %s160 = sshll.u32 [#allocation5], 4
          %s161 = int_to_ptr.vmem [resolvable:$true] %s160
          %163 = dma.hbm_to_vmem [thread:$0]  %s158, 16, %s161, [#allocation6]
        $region16: #{tpu_custom_call.1} parent=11 // pred_fallthru
          _
        // Predicated region
        $region17: #{tpu_custom_call.1} parent=11 // pred_check
          %p164 = pneg %p108
        $region18: #{tpu_custom_call.1} parent=11 // pred_check_branch
          %166 = sbr.rel (%p164) target = $region20
        $region19: #{tpu_custom_call.1} parent=11 // pred_region
          %s168 = ssub.s32 16, 16
          %169 = vsyncadd [#allocation6], %s168
          %s170 = smul.addr %s26, 16
          %s171 = scalar_lea.hbm %s2, %s170
          %s173 = sshll.u32 [#allocation7], 4
          %s174 = int_to_ptr.vmem [resolvable:$true] %s173
          %176 = dma.hbm_to_vmem [thread:$0]  %s171, 16, %s174, [#allocation6]
        $region20: #{tpu_custom_call.1} parent=11 // pred_fallthru
          _
      $region12: #{tpu_custom_call.1} parent=5 // pred_fallthru
        _
      %p177 = scmp.lt.s32.totalorder %s16, 2
      // Predicated region
      $region21: #{tpu_custom_call.1} parent=5 // pred_check
        %p178 = pneg %p177
      $region22: #{tpu_custom_call.1} parent=5 // pred_check_branch
        %180 = sbr.rel (%p178) target = $region24
      $region23: #{tpu_custom_call.1} parent=5 // pred_region
        // Predicated region
        $region25: #{tpu_custom_call.1} parent=23 // pred_check
          %p181 = pneg %p50
        $region26: #{tpu_custom_call.1} parent=23 // pred_check_branch
          %183 = sbr.rel (%p181) target = $region28
        $region27: #{tpu_custom_call.1} parent=23 // pred_region
          %s184 = sand.u32 %s40, 1
          %s185 = scalar_lea.sflag [#allocation3], %s184
          %s186 = sand.u32 %s40, 1
          %s187 = smul.addr %s186, 8
          %s188 = scalar_lea.vmem [#allocation2], %s187
          %s190 = ssub.s32 128, 128
          %191 = vsyncadd %s185, %s190
          %s192 = sadd.s32 %s24, %s23
          %s193 = smul.addr %s192, 128
          %s194 = scalar_lea.hbm %s0, %s193
          %s196 = sshll.u32 %s188, 4
          %s197 = int_to_ptr.vmem [resolvable:$true] %s196
          %199 = dma.hbm_to_vmem [thread:$0]  %s194, 128, %s197, %s185
        $region28: #{tpu_custom_call.1} parent=23 // pred_fallthru
          _
      $region24: #{tpu_custom_call.1} parent=5 // pred_fallthru
        _
      %p200 = scmp.le.s32.totalorder 1, %s16
      %p201 = scmp.lt.s32.totalorder %s16, 3
      %p202 = pnand %p200, %p201
      %p203 = pneg %p202
      // Predicated region
      $region29: #{tpu_custom_call.1} parent=5 // pred_check
        _
      $region30: #{tpu_custom_call.1} parent=5 // pred_check_branch
        %205 = sbr.rel (%p202) target = $region32
      $region31: #{tpu_custom_call.1} parent=5 // pred_region
        %s206 = ssub.s32 %s16, 1
        %s207 = sand.u32 %s43, 1
        %s208 = scalar_lea.sflag [#allocation3], %s207
        %s209 = sand.u32 %s43, 1
        %s210 = smul.addr %s209, 8
        %s211 = scalar_lea.vmem [#allocation2], %s210
        // Predicated region
        $region33: #{tpu_custom_call.1} parent=31 // pred_check
          %p212 = pneg %p56
        $region34: #{tpu_custom_call.1} parent=31 // pred_check_branch
          %214 = sbr.rel (%p212) target = $region36
        $region35: #{tpu_custom_call.1} parent=31 // pred_region
          %215 = dma.done %s208, 128
        $region36: #{tpu_custom_call.1} parent=31 // pred_fallthru
          _
        // Predicated region
        $region37: #{tpu_custom_call.1} parent=31 // pred_check
          %p216 = pneg %p82
        $region38: #{tpu_custom_call.1} parent=31 // pred_check_branch
          %218 = sbr.rel (%p216) target = $region40
        $region39: #{tpu_custom_call.1} parent=31 // pred_region
          %219 = dma.done [#allocation6], 16
        $region40: #{tpu_custom_call.1} parent=31 // pred_fallthru
          _
        // Predicated region
        $region41: #{tpu_custom_call.1} parent=31 // pred_check
          %p220 = pneg %p108
        $region42: #{tpu_custom_call.1} parent=31 // pred_check_branch
          %222 = sbr.rel (%p220) target = $region44
        $region43: #{tpu_custom_call.1} parent=31 // pred_region
          %223 = dma.done [#allocation6], 16
        $region44: #{tpu_custom_call.1} parent=31 // pred_fallthru
          _
        %s224 = sand.u32 %s43, 1
        %s225 = scalar_lea.sflag [#allocation3], %s224
        %s226 = sand.u32 %s43, 1
        %s227 = smul.addr %s226, 8
        %s228 = scalar_lea.vmem [#allocation2], %s227
        %p229 = pneg %p56
        %p230 = pneg %p53
        %p231 = pneg %p82
        %p232 = pneg %p79
        %p233 = pneg %p108
        %p234 = pneg %p105
        %p235 = pneg %p136
        %p236 = pneg %p133
        %s237 = sand.u32 %s123, 1
        %s238 = scalar_lea.sflag [#allocation4], %s237
        %s239 = sand.u32 %s123, 1
        %s240 = smul.addr %s239, 8
        %s241 = scalar_lea.vmem [#allocation8], %s240
        %v242 = vld [vmem:[%s211] sm:$0xff]
        %vm243 = vcmask 261120
        %v244 = vsel %vm243, %v242, 0.0
        %v245 = vrot.slane %v244, 4
        %v246 = vadd.f32 %v244, %v245
        %v247 = vrot.slane %v246, 2
        %v248 = vadd.f32 %v246, %v247
        %v249 = vrot.slane %v248, 1
        %v250 = vadd.f32 %v248, %v249
        %v251 = vrcp.pop 8.0
        %v252 = vmul.f32 %v250, %v251
        %v253 = vsub.f32 %v242, %v252
        %v254 = vmul.f32 %v253, %v253
        %v255 = vsel %vm243, %v254, 0.0
        %v256 = vrot.slane %v255, 4
        %v257 = vadd.f32 %v255, %v256
        %v258 = vrot.slane %v257, 2
        %v259 = vadd.f32 %v257, %v258
        %v260 = vrot.slane %v259, 1
        %v261 = vadd.f32 %v259, %v260
        %v262 = vrcp.pop 7.0
        %v263 = vmul.f32 %v261, %v262
        %v264 = vadd.f32 %v263, 1e-05
        %v265 = vrsqrt.pop %v264
        %v266 = vld [vmem:[#allocation5] sm:$0x1]
        %v267 = vmul.f32 %v266, %v265
        %v269 = vlaneseq
        %v270 = vshrl.u32 %v269, 7
        %v271 = vsub.s32 0, %v270
        %v272 = vrot.slane %v267, %v271
        %v274 = vmul.f32 %v253, %v272
        %v275 = vld [vmem:[#allocation7] sm:$0x1]
        %v277 = vlaneseq
        %v278 = vshrl.u32 %v277, 7
        %v279 = vsub.s32 0, %v278
        %v280 = vrot.slane %v275, %v279
        %v282 = vadd.f32 %v274, %v280
        %283 = vst.msk [vmem:[%s241] sm:$0xff] %vm243, %v282
        %s284 = sand.u32 %s123, 1
        %s285 = scalar_lea.sflag [#allocation4], %s284
        %s286 = sand.u32 %s123, 1
        %s287 = smul.addr %s286, 8
        %s288 = scalar_lea.vmem [#allocation8], %s287
        // Predicated region
        $region45: #{tpu_custom_call.1} parent=31 // pred_check
          %p289 = pneg %p133
        $region46: #{tpu_custom_call.1} parent=31 // pred_check_branch
          %291 = sbr.rel (%p289) target = $region48
        $region47: #{tpu_custom_call.1} parent=31 // pred_region
          %s293 = ssub.s32 128, 128
          %294 = vsyncadd %s285, %s293
          %s295 = sadd.s32 %s26, %s25
          %s296 = smul.addr %s295, 128
          %s297 = scalar_lea.hbm %s3, %s296
          %s299 = sshll.u32 %s288, 4
          %s300 = int_to_ptr.vmem [resolvable:$true] %s299
          %302 = dma.vmem_to_hbm [thread:$0]  %s300, 128, %s297, %s285
        $region48: #{tpu_custom_call.1} parent=31 // pred_fallthru
          _
      $region32: #{tpu_custom_call.1} parent=5 // pred_fallthru
        _
      %p303 = scmp.le.s32.totalorder 2, %s16
      // Predicated region
      $region49: #{tpu_custom_call.1} parent=5 // pred_check
        %p304 = pneg %p303
      $region50: #{tpu_custom_call.1} parent=5 // pred_check_branch
        %306 = sbr.rel (%p304) target = $region52
      $region51: #{tpu_custom_call.1} parent=5 // pred_region
        %s307 = ssub.s32 %s16, 2
        // Predicated region
        $region53: #{tpu_custom_call.1} parent=51 // pred_check
          %p308 = pneg %p139
        $region54: #{tpu_custom_call.1} parent=51 // pred_check_branch
          %310 = sbr.rel (%p308) target = $region56
        $region55: #{tpu_custom_call.1} parent=51 // pred_region
          %s311 = sand.u32 %s124, 1
          %s312 = scalar_lea.sflag [#allocation4], %s311
          %s313 = sand.u32 %s124, 1
          %s314 = smul.addr %s313, 8
          %s315 = scalar_lea.vmem [#allocation8], %s314
          %316 = dma.done %s312, 128
        $region56: #{tpu_custom_call.1} parent=51 // pred_fallthru
          _
      $region52: #{tpu_custom_call.1} parent=5 // pred_fallthru
        _
    $region6: #{tpu_custom_call.1} parent=1 // loop_footer
      %s20 = sadd.s32 1, %s16
    $region7: #{tpu_custom_call.1} parent=1 // loop_footer_branch
      %15 = sbr.rel target = $region3
    $region8: #{tpu_custom_call.1} parent=1 // loop_exit
      _
    %317 = vsyncpa [#allocation3], 1
    %s318 = scalar_lea.sflag [#allocation3], 1
    %319 = vsyncpa %s318, 1
    %320 = vsyncpa [#allocation6], 1
    %321 = vsyncpa [#allocation4], 1
    %s322 = scalar_lea.sflag [#allocation4], 1
    %323 = vsyncpa %s322, 1

</llo_original>
